<compile_context>
chip_gen: v6e
topology: v6e:2x2x1
jax: 0.10.0
libtpu: 0.0.40
codegen_flags: <defaults>
</compile_context>

<pallas_src>
import functools

import jax
import jax.numpy as jnp
from jax.experimental import pallas as pl
from jax.experimental.pallas import tpu as pltpu

_LANES = 128
_SUBLANES = 8


def _dice_kernel(pred_ref, tgt_ref, inter_out_ref, union_out_ref,
                 inter_acc, union_acc, *,
                 valid_rows, tile_rows, steps_per_shard, needs_mask):
    s = pl.program_id(0)          # shard (parallel axis; v7x megacore)
    j = pl.program_id(1)          # row-block step within the shard (arbitrary)

    @pl.when(j == 0)
    def _():
        inter_acc[...] = jnp.zeros_like(inter_acc)
        union_acc[...] = jnp.zeros_like(union_acc)

    # Upcast inside the kernel (inputs stream in their native dtype).
    p = pred_ref[...].astype(jnp.float32)
    t = tgt_ref[...].astype(jnp.float32)

    if needs_mask:  # static: only when the last row-block is partial
        row0 = (s * steps_per_shard + j) * tile_rows
        rid = jax.lax.broadcasted_iota(jnp.int32, p.shape, 0) + row0
        keep = rid < valid_rows
        p = jnp.where(keep, p, 0.0)
        t = jnp.where(keep, t, 0.0)

    # Pure elementwise VALU accumulation; no per-step cross-lane reduce.
    inter_acc[...] += p * t
    union_acc[...] += p + t

    @pl.when(j == steps_per_shard - 1)
    def _():
        # One XLU reduce per shard, broadcast into this shard's output block.
        inter_out_ref[...] = jnp.broadcast_to(
            jnp.sum(inter_acc[...]), inter_out_ref.shape)
        union_out_ref[...] = jnp.broadcast_to(
            jnp.sum(union_acc[...]), union_out_ref.shape)


def dice_loss(pred, target, smooth=1e-6, max_tile_rows=2048):
    assert pred.shape == target.shape, "pred and target must have the same shape"
    n = int(pred.size)

    p = pred.reshape(-1)
    t = target.reshape(-1)
    if not jnp.issubdtype(p.dtype, jnp.floating):
        p = p.astype(jnp.float32)
    if not jnp.issubdtype(t.dtype, jnp.floating):
        t = t.astype(jnp.float32)

    # Only pad the (rare) ragged-lane tail; the common multiple-of-128 case is
    # a free reshape (no extra HBM copy).
    padded_n = ((n + _LANES - 1) // _LANES) * _LANES
    if padded_n != n:
        p = jnp.pad(p, (0, padded_n - n))
        t = jnp.pad(t, (0, padded_n - n))
    rows = padded_n // _LANES

    if rows <= max_tile_rows:
        tile_rows = rows                 # single block == full extent (always legal)
        total_steps = 1
    else:
        tile_rows = max_tile_rows        # multiple of 8
        total_steps = pl.cdiv(rows, tile_rows)

    # Split the row-block range across 2 TensorCores when it divides evenly
    # (v7x megacore; harmless sequential loop on v5e/v6e).
    num_shards = 2 if (total_steps >= 2 and total_steps % 2 == 0) else 1
    steps_per_shard = total_steps // num_shards
    needs_mask = (rows % tile_rows) != 0

    p2 = p.reshape(rows, _LANES)
    t2 = t.reshape(rows, _LANES)

    kernel = functools.partial(
        _dice_kernel,
        valid_rows=rows,
        tile_rows=tile_rows,
        steps_per_shard=steps_per_shard,
        needs_mask=needs_mask,
    )

    in_map = lambda s, j: (s * steps_per_shard + j, 0)
    out_map = lambda s, j: (s, 0, 0)

    # Per-shard partial sums live in an (8, 128)-aligned block per shard.
    out_shape = jax.ShapeDtypeStruct((num_shards, _SUBLANES, _LANES), jnp.float32)
    out_block = pl.BlockSpec((1, _SUBLANES, _LANES), out_map)

    inter_part, union_part = pl.pallas_call(
        kernel,
        out_shape=(out_shape, out_shape),
        grid_spec=pltpu.PrefetchScalarGridSpec(
            num_scalar_prefetch=0,
            grid=(num_shards, steps_per_shard),
            in_specs=[
                pl.BlockSpec((tile_rows, _LANES), in_map),
                pl.BlockSpec((tile_rows, _LANES), in_map),
            ],
            out_specs=(out_block, out_block),
            scratch_shapes=[
                pltpu.VMEM((tile_rows, _LANES), jnp.float32),  # sum(p*t) accumulator
                pltpu.VMEM((tile_rows, _LANES), jnp.float32),  # sum(p+t) accumulator
            ],
        ),
        compiler_params=pltpu.CompilerParams(
            dimension_semantics=("parallel", "arbitrary")),
    )(p2, t2)

    intersection = jnp.sum(inter_part[:, 0, 0])
    union = jnp.sum(union_part[:, 0, 0])
    dice = (2.0 * intersection + smooth) / (union + smooth)
    return 1.0 - dice


def dice_loss_ref(pred, target, smooth=1e-6):
    pred = pred.astype(jnp.float32)
    target = target.astype(jnp.float32)
    intersection = jnp.sum(pred * target)
    union = jnp.sum(pred) + jnp.sum(target)
    dice = (2.0 * intersection + smooth) / (union + smooth)
    return 1.0 - dice


if __name__ == "__main__":
    key = jax.random.PRNGKey(0)

    # Primary example: NCHW segmentation-style inputs, as in the PyTorch module.
    k1, k2 = jax.random.split(key)
    pred = jax.nn.sigmoid(jax.random.normal(k1, (2, 4, 16, 16), jnp.float32))
    target = (jax.random.uniform(k2, (2, 4, 16, 16)) > 0.5).astype(jnp.float32)

    out = dice_loss(pred, target)
    out = jax.block_until_ready(out)
    ref = dice_loss_ref(pred, target)
    assert jnp.allclose(out, ref, atol=1e-5, rtol=1e-5), (out, ref)

    # Exercise the multi-block path with a partial last block (in-kernel mask).
    k3, k4 = jax.random.split(k1)
    pred_b = jax.nn.sigmoid(jax.random.normal(k3, (2, 4, 80, 128), jnp.float32))
    target_b = (jax.random.uniform(k4, (2, 4, 80, 128)) > 0.5).astype(jnp.float32)
    out_b = jax.block_until_ready(dice_loss(pred_b, target_b, max_tile_rows=256))
    ref_b = dice_loss_ref(pred_b, target_b)
    assert jnp.allclose(out_b, ref_b, atol=1e-5, rtol=1e-5), (out_b, ref_b)

    # Exercise the 2-shard ("parallel" leading axis) path with an even split.
    k5, k6 = jax.random.split(k2)
    pred_c = jax.nn.sigmoid(jax.random.normal(k5, (2, 4, 128, 128), jnp.float32))
    target_c = (jax.random.uniform(k6, (2, 4, 128, 128)) > 0.5).astype(jnp.float32)
    out_c = jax.block_until_ready(dice_loss(pred_c, target_c, max_tile_rows=256))
    ref_c = dice_loss_ref(pred_c, target_c)
    assert jnp.allclose(out_c, ref_c, atol=1e-5, rtol=1e-5), (out_c, ref_c)

    print("KERNEL_OK")
</pallas_src>

<mosaic_0001>
module attributes {stable_mosaic.version = 11 : i64} {
  func.func @_dice_kernel(%arg0: i32, %arg1: i32, %arg2: memref<16x128xf32, #tpu.memory_space<vmem>>, %arg3: memref<16x128xf32, #tpu.memory_space<vmem>>, %arg4: memref<1x8x128xf32, #tpu.memory_space<vmem>>, %arg5: memref<1x8x128xf32, #tpu.memory_space<vmem>>, %arg6: memref<16x128xf32, #tpu.memory_space<vmem>>, %arg7: memref<16x128xf32, #tpu.memory_space<vmem>>) attributes {dimension_semantics = [#tpu.dimension_semantics<parallel>, #tpu.dimension_semantics<arbitrary>], iteration_bounds = array<i64: 1, 1>, scalar_prefetch = 0 : i64, scratch_operands = 2 : i64, tpu.core_type = #tpu.core_type<tc>, window_params = [{transform_indices = @transform_0, window_bounds = array<i64: 16, 128>}, {transform_indices = @transform_1, window_bounds = array<i64: 16, 128>}, {transform_indices = @transform_2, window_bounds = array<i64: 1, 8, 128>}, {transform_indices = @transform_3, window_bounds = array<i64: 1, 8, 128>}]} {
    %c0_i32 = arith.constant 0 : i32
    %0 = arith.cmpi eq, %arg1, %c0_i32 : i32
    %1 = arith.extui %0 : i1 to i32
    %c0_i32_0 = arith.constant 0 : i32
    %2 = arith.cmpi ne, %1, %c0_i32_0 : i32
    scf.if %2 {
      %cst = arith.constant 0.000000e+00 : f32
      %16 = vector.broadcast %cst : f32 to vector<16x128xf32>
      %c0_14 = arith.constant 0 : index
      %c0_15 = arith.constant 0 : index
      %17 = vector.load %arg6[%c0_14, %c0_15] : memref<16x128xf32, #tpu.memory_space<vmem>>, vector<16x128xf32>
      tpu.vector_store %arg6[%c0_14, %c0_15], %16 {strides = array<i32>} : memref<16x128xf32, #tpu.memory_space<vmem>>, vector<16x128xf32>,
      %cst_16 = arith.constant 0.000000e+00 : f32
      %18 = vector.broadcast %cst_16 : f32 to vector<16x128xf32>
      %c0_17 = arith.constant 0 : index
      %c0_18 = arith.constant 0 : index
      %19 = vector.load %arg7[%c0_17, %c0_18] : memref<16x128xf32, #tpu.memory_space<vmem>>, vector<16x128xf32>
      tpu.vector_store %arg7[%c0_17, %c0_18], %18 {strides = array<i32>} : memref<16x128xf32, #tpu.memory_space<vmem>>, vector<16x128xf32>,
    } else {
    }
    %c0 = arith.constant 0 : index
    %c0_1 = arith.constant 0 : index
    %3 = vector.load %arg2[%c0, %c0_1] : memref<16x128xf32, #tpu.memory_space<vmem>>, vector<16x128xf32>
    %c0_2 = arith.constant 0 : index
    %c0_3 = arith.constant 0 : index
    %4 = vector.load %arg3[%c0_2, %c0_3] : memref<16x128xf32, #tpu.memory_space<vmem>>, vector<16x128xf32>
    %c0_4 = arith.constant 0 : index
    %c0_5 = arith.constant 0 : index
    %5 = vector.load %arg6[%c0_4, %c0_5] : memref<16x128xf32, #tpu.memory_space<vmem>>, vector<16x128xf32>
    %6 = arith.mulf %3, %4 : vector<16x128xf32>
    %7 = arith.addf %5, %6 : vector<16x128xf32>
    %c0_6 = arith.constant 0 : index
    %c0_7 = arith.constant 0 : index
    %8 = vector.load %arg6[%c0_6, %c0_7] : memref<16x128xf32, #tpu.memory_space<vmem>>, vector<16x128xf32>
    tpu.vector_store %arg6[%c0_6, %c0_7], %7 {strides = array<i32>} : memref<16x128xf32, #tpu.memory_space<vmem>>, vector<16x128xf32>,
    %c0_8 = arith.constant 0 : index
    %c0_9 = arith.constant 0 : index
    %9 = vector.load %arg7[%c0_8, %c0_9] : memref<16x128xf32, #tpu.memory_space<vmem>>, vector<16x128xf32>
    %10 = arith.addf %3, %4 : vector<16x128xf32>
    %11 = arith.addf %9, %10 : vector<16x128xf32>
    %c0_10 = arith.constant 0 : index
    %c0_11 = arith.constant 0 : index
    %12 = vector.load %arg7[%c0_10, %c0_11] : memref<16x128xf32, #tpu.memory_space<vmem>>, vector<16x128xf32>
    tpu.vector_store %arg7[%c0_10, %c0_11], %11 {strides = array<i32>} : memref<16x128xf32, #tpu.memory_space<vmem>>, vector<16x128xf32>,
    %c0_i32_12 = arith.constant 0 : i32
    %13 = arith.cmpi eq, %arg1, %c0_i32_12 : i32
    %14 = arith.extui %13 : i1 to i32
    %c0_i32_13 = arith.constant 0 : i32
    %15 = arith.cmpi ne, %14, %c0_i32_13 : i32
    scf.if %15 {
      %c0_14 = arith.constant 0 : index
      %c0_15 = arith.constant 0 : index
      %16 = vector.load %arg6[%c0_14, %c0_15] : memref<16x128xf32, #tpu.memory_space<vmem>>, vector<16x128xf32>
      %17 = vector.shape_cast %16 : vector<16x128xf32> to vector<1x16x128xf32>
      %cst = arith.constant dense<0.000000e+00> : vector<1xf32>
      %18 = vector.multi_reduction <add>, %17, %cst [1, 2] : vector<1x16x128xf32> to vector<1xf32>
      %19 = vector.shape_cast %18 : vector<1xf32> to vector<1x1x1xf32>
      %20 = vector.extract %19[0, 0, 0] : f32 from vector<1x1x1xf32>
      %21 = vector.broadcast %20 : f32 to vector<1x8x128xf32>
      %c0_16 = arith.constant 0 : index
      %c0_17 = arith.constant 0 : index
      %c0_18 = arith.constant 0 : index
      %22 = vector.load %arg4[%c0_16, %c0_17, %c0_18] : memref<1x8x128xf32, #tpu.memory_space<vmem>>, vector<1x8x128xf32>
      tpu.vector_store %arg4[%c0_16, %c0_17, %c0_18], %21 {strides = array<i32>} : memref<1x8x128xf32, #tpu.memory_space<vmem>>, vector<1x8x128xf32>,
      %c0_19 = arith.constant 0 : index
      %c0_20 = arith.constant 0 : index
      %23 = vector.load %arg7[%c0_19, %c0_20] : memref<16x128xf32, #tpu.memory_space<vmem>>, vector<16x128xf32>
      %24 = vector.shape_cast %23 : vector<16x128xf32> to vector<1x16x128xf32>
      %cst_21 = arith.constant dense<0.000000e+00> : vector<1xf32>
      %25 = vector.multi_reduction <add>, %24, %cst_21 [1, 2] : vector<1x16x128xf32> to vector<1xf32>
      %26 = vector.shape_cast %25 : vector<1xf32> to vector<1x1x1xf32>
      %27 = vector.extract %26[0, 0, 0] : f32 from vector<1x1x1xf32>
      %28 = vector.broadcast %27 : f32 to vector<1x8x128xf32>
      %c0_22 = arith.constant 0 : index
      %c0_23 = arith.constant 0 : index
      %c0_24 = arith.constant 0 : index
      %29 = vector.load %arg5[%c0_22, %c0_23, %c0_24] : memref<1x8x128xf32, #tpu.memory_space<vmem>>, vector<1x8x128xf32>
      tpu.vector_store %arg5[%c0_22, %c0_23, %c0_24], %28 {strides = array<i32>} : memref<1x8x128xf32, #tpu.memory_space<vmem>>, vector<1x8x128xf32>,
    } else {
    }
    return
  }
  func.func @transform_0(%arg0: i32, %arg1: i32) -> (i32, i32) {
    %c1_i32 = arith.constant 1 : i32
    %0 = arith.muli %arg0, %c1_i32 : i32
    %1 = arith.addi %0, %arg1 : i32
    %c0_i32 = arith.constant 0 : i32
    %c0_i32_0 = arith.constant 0 : i32
    return %1, %c0_i32 : i32, i32
  }
  func.func @transform_1(%arg0: i32, %arg1: i32) -> (i32, i32) {
    %c1_i32 = arith.constant 1 : i32
    %0 = arith.muli %arg0, %c1_i32 : i32
    %1 = arith.addi %0, %arg1 : i32
    %c0_i32 = arith.constant 0 : i32
    %c0_i32_0 = arith.constant 0 : i32
    return %1, %c0_i32 : i32, i32
  }
  func.func @transform_2(%arg0: i32, %arg1: i32) -> (i32, i32, i32) {
    %c0_i32 = arith.constant 0 : i32
    %c0_i32_0 = arith.constant 0 : i32
    %c0_i32_1 = arith.constant 0 : i32
    return %arg0, %c0_i32, %c0_i32_0 : i32, i32, i32
  }
  func.func @transform_3(%arg0: i32, %arg1: i32) -> (i32, i32, i32) {
    %c0_i32 = arith.constant 0 : i32
    %c0_i32_0 = arith.constant 0 : i32
    %c0_i32_1 = arith.constant 0 : i32
    return %arg0, %c0_i32, %c0_i32_0 : i32, i32, i32
  }
}

</mosaic_0001>

<llo_original>
// kernel: tpu_custom_call.1
$region0: #{tpu_custom_call.1}
  #allocation0 [shape = 'u32[]', space=smem, size = 0x4, offset = 0x4, fixed_abs, tag = 'smem constant byte address 0x4 - core index']
  #allocation1 [shape = 'u32[144,128]{1,0:T(1,128)}', space=vmem, size = 0x12000, scoped, tag = 'internal scratch']
  #allocation2 [shape = 'f32[16,128]{1,0:T(8,128)}', space=vmem, size = 0x2000, scoped, tag = 'scratch operand']
  #allocation3 [shape = 'f32[16,128]{1,0:T(8,128)}', space=vmem, size = 0x2000, scoped, tag = 'scratch operand']
  %s0 = inlined_call_operand.hbm [shape: f32[16,128], index: 0, kind: input, shape index: {}]
  %s1 = inlined_call_operand.hbm [shape: f32[16,128], index: 1, kind: input, shape index: {}]
  %s2 = inlined_call_operand.hbm [shape: f32[1,8,128], index: 2, kind: output, shape index: {0}]
  %s3 = inlined_call_operand.hbm [shape: f32[1,8,128], index: 3, kind: output, shape index: {1}]
  %4 = xla_tuple %s2, %s3
  %s5 = sld [smem:[#allocation0]]
  $region42: #{tpu_custom_call.1} parent=0
    _
  %s7 = ssub.s32 1, %s5
  %s8 = scalar_select 0, %s7, %s5
  $region1: #{tpu_custom_call.1} parent=0
    #allocation4 [shape = 'u8[8192]{0}', space=vmem, size = 0x2000, scoped, tag = 'input window, operand 0, single buffered']
    #allocation5 [shape = 's32[1]{0}', space=sflag, size = 0x4, scoped, tag = 'scoped memory for tpu_custom_call.1']
    #allocation6 [shape = 's32[1]{0}', space=sflag, size = 0x4, scoped, tag = 'scoped memory for tpu_custom_call.1']
    #allocation7 [shape = 'u8[8192]{0}', space=vmem, size = 0x2000, scoped, tag = 'input window, operand 1, single buffered']
    #allocation8 [shape = 's32[1]{0}', space=sflag, size = 0x4, scoped, tag = 'scoped memory for tpu_custom_call.1']
    #allocation9 [shape = 'u8[4096]{0}', space=vmem, size = 0x1000, scoped, tag = 'output window, operand 0, single buffered']
    #allocation10 [shape = 'u8[4096]{0}', space=vmem, size = 0x1000, scoped, tag = 'output window, operand 1, single buffered']
    #allocation11 [shape = 's32[1]{0}', space=sflag, size = 0x4, scoped, tag = 'scoped memory for tpu_custom_call.1']
    %9 = vsyncpa [#allocation5], 0
    %10 = vsyncpa [#allocation8], 0
    %11 = vsyncpa [#allocation6], 0
    %12 = vsyncpa [#allocation11], 0
    // Predicated region
    $region2: #{tpu_custom_call.1} parent=1 // pred_check
      _
    $region3: #{tpu_custom_call.1} parent=1 // pred_check_branch
      %14 = sbr.rel (0) target = $region5
    $region4: #{tpu_custom_call.1} parent=1 // pred_region
      %s15 = sadd.s32 0, 0
      %s16 = smul.u32 2, %s15
      %s18 = ssub.s32 256, 256
      %19 = vsyncadd [#allocation5], %s18
      %s20 = smul.addr %s16, 128
      %s21 = scalar_lea.hbm %s0, %s20
      %s22 = sshll.u32 [#allocation4], 4
      %s23 = int_to_ptr.vmem [resolvable:$true] %s22
      %28 = dma.hbm_to_vmem [thread:$0]  %s21, 256, %s23, [#allocation5], 128, 128, 8
    $region5: #{tpu_custom_call.1} parent=1 // pred_fallthru
      _
    // Predicated region
    $region6: #{tpu_custom_call.1} parent=1 // pred_check
      _
    $region7: #{tpu_custom_call.1} parent=1 // pred_check_branch
      %30 = sbr.rel (0) target = $region9
    $region8: #{tpu_custom_call.1} parent=1 // pred_region
      %s31 = sadd.s32 0, 0
      %s32 = smul.u32 2, %s31
      %s34 = ssub.s32 256, 256
      %35 = vsyncadd [#allocation8], %s34
      %s36 = smul.addr %s32, 128
      %s37 = scalar_lea.hbm %s1, %s36
      %s38 = sshll.u32 [#allocation7], 4
      %s39 = int_to_ptr.vmem [resolvable:$true] %s38
      %44 = dma.hbm_to_vmem [thread:$0]  %s37, 256, %s39, [#allocation8], 128, 128, 8
    $region9: #{tpu_custom_call.1} parent=1 // pred_fallthru
      _
    // Predicated region
    $region10: #{tpu_custom_call.1} parent=1 // pred_check
      _
    $region11: #{tpu_custom_call.1} parent=1 // pred_check_branch
      %46 = sbr.rel (0) target = $region13
    $region12: #{tpu_custom_call.1} parent=1 // pred_region
      %47 = dma.done [#allocation5], 256
    $region13: #{tpu_custom_call.1} parent=1 // pred_fallthru
      _
    // Predicated region
    $region14: #{tpu_custom_call.1} parent=1 // pred_check
      _
    $region15: #{tpu_custom_call.1} parent=1 // pred_check_branch
      %49 = sbr.rel (0) target = $region17
    $region16: #{tpu_custom_call.1} parent=1 // pred_region
      %50 = dma.done [#allocation8], 256
    $region17: #{tpu_custom_call.1} parent=1 // pred_fallthru
      _
    %s51 = sadd.s32 0, 0
    %s52 = smul.u32 2, %s51
    %s53 = sadd.s32 0, 0
    %s54 = smul.u32 2, %s53
    %p55 = scmp.eq.s32.totalorder 0, 0
    // Predicated region
    $region18: #{tpu_custom_call.1} parent=1 // pred_check
      %p56 = pneg %p55
    $region19: #{tpu_custom_call.1} parent=1 // pred_check_branch
      %58 = sbr.rel (%p56) target = $region21
    $region20: #{tpu_custom_call.1} parent=1 // pred_region
      %59 = vst [vmem:[#allocation2] sm:$0xff] 0.0
      %60 = vst [vmem:[#allocation2 + $0x8] sm:$0xff] 0.0
      %61 = vst [vmem:[#allocation3] sm:$0xff] 0.0
      %62 = vst [vmem:[#allocation3 + $0x8] sm:$0xff] 0.0
    $region21: #{tpu_custom_call.1} parent=1 // pred_fallthru
      _
    %v63 = vld [vmem:[#allocation4] sm:$0xff]
    %v64 = vld [vmem:[#allocation4 + $0x8] sm:$0xff]
    %v65 = vld [vmem:[#allocation7] sm:$0xff]
    %v66 = vld [vmem:[#allocation7 + $0x8] sm:$0xff]
    %v67 = vld [vmem:[#allocation2] sm:$0xff]
    %v68 = vld [vmem:[#allocation2 + $0x8] sm:$0xff]
    %v69 = vmul.f32 %v63, %v65
    %v70 = vmul.f32 %v64, %v66
    %v71 = vadd.f32 %v67, %v69
    %v72 = vadd.f32 %v68, %v70
    %73 = vst [vmem:[#allocation2] sm:$0xff] %v71
    %74 = vst [vmem:[#allocation2 + $0x8] sm:$0xff] %v72
    %v75 = vld [vmem:[#allocation3] sm:$0xff]
    %v76 = vld [vmem:[#allocation3 + $0x8] sm:$0xff]
    %v77 = vadd.f32 %v63, %v65
    %v78 = vadd.f32 %v64, %v66
    %v79 = vadd.f32 %v75, %v77
    %v80 = vadd.f32 %v76, %v78
    %81 = vst [vmem:[#allocation3] sm:$0xff] %v79
    %82 = vst [vmem:[#allocation3 + $0x8] sm:$0xff] %v80
    // Predicated region
    $region22: #{tpu_custom_call.1} parent=1 // pred_check
      %p83 = pneg %p55
    $region23: #{tpu_custom_call.1} parent=1 // pred_check_branch
      %85 = sbr.rel (%p83) target = $region25
    $region24: #{tpu_custom_call.1} parent=1 // pred_region
      %v86 = vld [vmem:[#allocation2] sm:$0xff]
      %v87 = vld [vmem:[#allocation2 + $0x8] sm:$0xff]
      %v88 = vadd.f32 %v86, %v87
      %89 = vadd.xlane.f32.xlu0 %v88
      %v90 = vpop.xlane.xlu0 %89
      %v91 = vrot.slane %v90, 4
      %v92 = vadd.f32 %v90, %v91
      %v93 = vrot.slane %v92, 2
      %v94 = vadd.f32 %v92, %v93
      %v95 = vrot.slane %v94, 1
      %v96 = vadd.f32 %v94, %v95
      %s97 = vtos %v96
      %v98 = vstv %s97
      %99 = vst [vmem:[#allocation9] sm:$0xff] %v98
      %v100 = vld [vmem:[#allocation3] sm:$0xff]
      %v101 = vld [vmem:[#allocation3 + $0x8] sm:$0xff]
      %v102 = vadd.f32 %v100, %v101
      %103 = vadd.xlane.f32.xlu0 %v102
      %v104 = vpop.xlane.xlu0 %103
      %v105 = vrot.slane %v104, 4
      %v106 = vadd.f32 %v104, %v105
      %v107 = vrot.slane %v106, 2
      %v108 = vadd.f32 %v106, %v107
      %v109 = vrot.slane %v108, 1
      %v110 = vadd.f32 %v108, %v109
      %s111 = vtos %v110
      %v112 = vstv %s111
      %113 = vst [vmem:[#allocation10] sm:$0xff] %v112
    $region25: #{tpu_custom_call.1} parent=1 // pred_fallthru
      _
    // Predicated region
    $region26: #{tpu_custom_call.1} parent=1 // pred_check
      _
    $region27: #{tpu_custom_call.1} parent=1 // pred_check_branch
      %115 = sbr.rel (0) target = $region29
    $region28: #{tpu_custom_call.1} parent=1 // pred_region
      %s117 = ssub.s32 128, 128
      %118 = vsyncadd [#allocation6], %s117
      %s120 = sshll.u32 [#allocation9], 4
      %s121 = int_to_ptr.vmem [resolvable:$true] %s120
      %123 = dma.vmem_to_hbm [thread:$0]  %s121, 128, %s2, [#allocation6]
    $region29: #{tpu_custom_call.1} parent=1 // pred_fallthru
      _
    // Predicated region
    $region30: #{tpu_custom_call.1} parent=1 // pred_check
      _
    $region31: #{tpu_custom_call.1} parent=1 // pred_check_branch
      %125 = sbr.rel (0) target = $region33
    $region32: #{tpu_custom_call.1} parent=1 // pred_region
      %s127 = ssub.s32 128, 128
      %128 = vsyncadd [#allocation11], %s127
      %s130 = sshll.u32 [#allocation10], 4
      %s131 = int_to_ptr.vmem [resolvable:$true] %s130
      %133 = dma.vmem_to_hbm [thread:$0]  %s131, 128, %s3, [#allocation11]
    $region33: #{tpu_custom_call.1} parent=1 // pred_fallthru
      _
    // Predicated region
    $region34: #{tpu_custom_call.1} parent=1 // pred_check
      _
    $region35: #{tpu_custom_call.1} parent=1 // pred_check_branch
      %135 = sbr.rel (0) target = $region37
    $region36: #{tpu_custom_call.1} parent=1 // pred_region
      %136 = dma.done [#allocation6], 128
    $region37: #{tpu_custom_call.1} parent=1 // pred_fallthru
      _
    // Predicated region
    $region38: #{tpu_custom_call.1} parent=1 // pred_check
      _
    $region39: #{tpu_custom_call.1} parent=1 // pred_check_branch
      %138 = sbr.rel (0) target = $region41
    $region40: #{tpu_custom_call.1} parent=1 // pred_region
      %139 = dma.done [#allocation11], 128
    $region41: #{tpu_custom_call.1} parent=1 // pred_fallthru
      _
    %140 = vsyncpa [#allocation5], 1
    %141 = vsyncpa [#allocation8], 1
    %142 = vsyncpa [#allocation6], 1
    %143 = vsyncpa [#allocation11], 1

</llo_original>
